<compile_context>
chip_gen: v7x
topology: tpu7x:2x2x1
jax: 0.10.0
libtpu: 0.0.40
codegen_flags: <defaults>
</compile_context>

<pallas_src>
import jax
import jax.numpy as jnp
from jax.experimental import pallas as pl
from jax.experimental.pallas import tpu as pltpu


# Packed parameter layout (f32, SMEM):
#   p[0]     GCNConv weight w1            (scalar)
#   p[1]     GCNConv bias   b1            (scalar)
#   p[2:6]   wsum = Wm1[0,:] + Wm1[1,:]   (Linear(2,4) weight, rows pre-summed)
#   p[6:10]  Linear(2,4) bias
#   p[10:14] Linear(4,1) weight
#   p[14]    Linear(4,1) bias
#   p[15]    unused padding
_P_LEN = 16
_HIDDEN = 4  # width of Linear(2, 4)


def gcn_kernel(p_ref, xrow_ref, at_ref, o_ref, acc_ref):
    """Grid = (M tiles, N reduction tiles); reduction axis last ("arbitrary")."""
    k = pl.program_id(1)

    @pl.when(k == 0)
    def _init():
        acc_ref[...] = jnp.zeros_like(acc_ref)

    # GCNConv aggregation for the kept nodes, on the MXU:
    #   h[g] = sum_j A[5g, j] * x[j] * w1
    # Operands go to the MXU in bf16 (A entries are small integer edge counts,
    # exactly representable); accumulation stays f32.
    xw = (xrow_ref[...] * p_ref[0]).astype(jnp.bfloat16)              # [1, tk]
    acc_ref[...] += jnp.dot(xw, at_ref[...],
                            preferred_element_type=jnp.float32)        # [1, tm]

    @pl.when(k == pl.num_programs(1) - 1)
    def _finalize():
        h = acc_ref[...] + p_ref[1]                                    # + GCNConv bias
        # cat([h, h], dim=1) @ Wm1 == h * (Wm1[0,:] + Wm1[1,:])  (exact identity)
        y = jnp.zeros_like(h) + p_ref[14]                              # Linear(4,1) bias
        for u in range(_HIDDEN):                                       # 4 hidden units
            z = jnp.maximum(h * p_ref[2 + u] + p_ref[6 + u], 0.0)      # Linear(2,4)+ReLU
            y = y + z * p_ref[10 + u]                                  # Linear(4,1)
        o_ref[...] = y                                                 # lane-dense [1, tm]


def _round_up(v, m):
    return ((v + m - 1) // m) * m


def pack_params(params):
    """Flatten all module parameters into one small SMEM-friendly f32 vector."""
    wsum = params["wm1"][0, :] + params["wm1"][1, :]   # cat([h,h]) @ Wm1 trick
    return jnp.concatenate([
        params["w1"].reshape(-1).astype(jnp.float32),     # [0]
        params["b1"].reshape(-1).astype(jnp.float32),     # [1]
        wsum.reshape(-1).astype(jnp.float32),             # [2:6]
        params["bm1"].reshape(-1).astype(jnp.float32),    # [6:10]
        params["wm2_t"].reshape(-1).astype(jnp.float32),  # [10:14]
        params["bm2"].reshape(-1).astype(jnp.float32),    # [14]
        jnp.zeros((1,), jnp.float32),                     # [15] pad
    ])


def build_kept_adjacency_t(edge_index, n, n_pad, m_pad):
    """A_kept^T[j, g] = #edges j -> 5g, zero-padded to [n_pad, m_pad], bf16.

    For a static graph this is call-invariant; callers can hoist/cache it instead
    of rebuilding the scatter every forward.
    """
    src, dst = edge_index[0], edge_index[1]
    keep = ((dst % 5) == 0).astype(jnp.float32)           # only rows 0, 5, 10, ...
    a_t = jnp.zeros((n_pad, m_pad), jnp.float32).at[src, dst // 5].add(keep)
    return a_t.astype(jnp.bfloat16)                        # small integer counts: exact


def gcn_forward(x, edge_index, params, *, tm_max=512, tk_max=512):
    """x: [N, 1] f32 node features; edge_index: [2, E] int32.  Requires N % 5 == 0."""
    n = x.shape[0]
    assert n % 5 == 0, "final view(-1, 5) requires N to be a multiple of 5"
    m = n // 5

    # Tile sizes: full (padded) extent when small, (sublane, lane)-aligned tiles
    # with zero padding otherwise.  M is padded to a lane multiple (128) so the
    # output row is lane-dense.
    if n <= tk_max:
        tk = _round_up(n, 16)                # bf16 sublane packing granularity
        n_pad = tk
    else:
        tk = tk_max
        n_pad = _round_up(n, tk)
    if m <= tm_max:
        tm = _round_up(m, 128)
        m_pad = tm
    else:
        tm = tm_max
        m_pad = _round_up(m, tm)

    a_t = build_kept_adjacency_t(edge_index, n, n_pad, m_pad)   # [n_pad, m_pad] bf16
    x_row = jnp.zeros((1, n_pad), jnp.float32).at[0, :n].set(x[:, 0])
    p = pack_params(params)

    grid = (m_pad // tm, n_pad // tk)

    y_row = pl.pallas_call(
        gcn_kernel,
        out_shape=jax.ShapeDtypeStruct((1, m_pad), jnp.float32),
        grid=grid,
        in_specs=[
            pl.BlockSpec(memory_space=pltpu.MemorySpace.SMEM),   # packed params (scalars)
            pl.BlockSpec((1, tk), lambda i, k: (0, k)),          # x row (f32)
            pl.BlockSpec((tk, tm), lambda i, k: (k, i)),         # A_kept^T (bf16)
        ],
        out_specs=pl.BlockSpec((1, tm), lambda i, k: (0, i)),
        scratch_shapes=[pltpu.VMEM((1, tm), jnp.float32)],       # f32 accumulator
        compiler_params=pltpu.CompilerParams(
            dimension_semantics=("parallel", "arbitrary"),
            vmem_limit_bytes=64 * 1024 * 1024,
        ),
    )(p, x_row, a_t)

    # x = x.view(-1, 5); return x[:, 0]  (output column g corresponds to node 5g)
    return y_row[0, :m]


def reference_forward(x, edge_index, params):
    """Pure-JAX re-implementation of the PyTorch module (unoptimized, full graph)."""
    n = x.shape[0]
    src, dst = edge_index[0], edge_index[1]
    adj = jnp.zeros((n, n), jnp.float32).at[dst, src].add(1.0)
    h = adj @ (x * params["w1"][0, 0]) + params["b1"][0, 0]
    hcat = jnp.concatenate([h, h], axis=1)                     # [N, 2]
    z = jnp.maximum(hcat @ params["wm1"] + params["bm1"], 0.0)
    y = z @ params["wm2_t"].T + params["bm2"]
    return y.reshape(-1, 5)[:, 0]


if __name__ == "__main__":
    key = jax.random.PRNGKey(0)
    k_x, k_wm1, k_bm1, k_wm2, k_bm2, k_x2, k_e2 = jax.random.split(key, 7)

    # Parameters (shapes from the module's __init__).  w1 is a power of two and x
    # is snapped to bf16-representable values so the bf16 MXU operands are exact
    # and the comparison against the f32 reference is meaningful.
    params = {
        "w1": jnp.full((1, 1), 0.5, jnp.float32),                      # GCNConv(1,1) weight
        "b1": jnp.full((1, 1), 0.25, jnp.float32),                     # GCNConv bias
        "wm1": jax.random.normal(k_wm1, (2, 4), jnp.float32) * 0.5,    # Linear(2,4) W (in x out)
        "bm1": jax.random.normal(k_bm1, (1, 4), jnp.float32) * 0.1,    # Linear(2,4) bias
        "wm2_t": jax.random.normal(k_wm2, (1, 4), jnp.float32) * 0.5,  # Linear(4,1) W (transposed)
        "bm2": jax.random.normal(k_bm2, (1, 1), jnp.float32) * 0.1,    # Linear(4,1) bias
    }

    # --- Test 1: module's native toy size (2 graphs of 5 nodes, undirected path edges) ---
    num_graphs, nodes_per_graph = 2, 5
    n = num_graphs * nodes_per_graph
    x = jax.random.normal(k_x, (n, 1), jnp.float32)
    x = x.astype(jnp.bfloat16).astype(jnp.float32)           # bf16-exact node features

    src_list, dst_list = [], []
    for g in range(num_graphs):
        off = g * nodes_per_graph
        for a in range(nodes_per_graph - 1):
            src_list += [off + a, off + a + 1]
            dst_list += [off + a + 1, off + a]
    edge_index = jnp.array([src_list, dst_list], dtype=jnp.int32)   # [2, 16]

    out = jax.block_until_ready(gcn_forward(x, edge_index, params))
    ref = reference_forward(x, edge_index, params)
    assert out.shape == (num_graphs,)
    assert jnp.allclose(out, ref, atol=1e-4, rtol=1e-4)

    # --- Test 2: larger random graph -> exercises the tiled multi-step reduction path ---
    n2, e2 = 5 * 300, 6000                                    # grid = (1, 3) at tk=512
    x2 = jax.random.normal(k_x2, (n2, 1), jnp.float32)
    x2 = x2.astype(jnp.bfloat16).astype(jnp.float32)
    edge_index2 = jax.random.randint(k_e2, (2, e2), 0, n2, dtype=jnp.int32)

    out2 = jax.block_until_ready(gcn_forward(x2, edge_index2, params))
    ref2 = reference_forward(x2, edge_index2, params)
    assert out2.shape == (n2 // 5,)
    assert jnp.allclose(out2, ref2, atol=1e-4, rtol=1e-4)

    print("KERNEL_OK")
</pallas_src>

<mosaic_0001>
module attributes {stable_mosaic.version = 11 : i64} {
  func.func @gcn_kernel(%arg0: i32, %arg1: i32, %arg2: memref<16xf32, #tpu.memory_space<smem>>, %arg3: memref<1x16xf32, #tpu.memory_space<vmem>>, %arg4: memref<16x128xbf16, #tpu.memory_space<vmem>>, %arg5: memref<1x128xf32, #tpu.memory_space<vmem>>, %arg6: memref<1x128xf32, #tpu.memory_space<vmem>>) attributes {dimension_semantics = [#tpu.dimension_semantics<parallel>, #tpu.dimension_semantics<arbitrary>], iteration_bounds = array<i64: 1, 1>, scalar_prefetch = 0 : i64, scratch_operands = 1 : i64, tpu.core_type = #tpu.core_type<tc>, window_params = [{transform_indices = @transform_0, window_bounds = array<i64: 16>}, {transform_indices = @transform_1, window_bounds = array<i64: 1, 16>}, {transform_indices = @transform_2, window_bounds = array<i64: 16, 128>}, {transform_indices = @transform_3, window_bounds = array<i64: 1, 128>}]} {
    %c0_i32 = arith.constant 0 : i32
    %0 = arith.cmpi eq, %arg1, %c0_i32 : i32
    %1 = arith.extui %0 : i1 to i32
    %c0_i32_0 = arith.constant 0 : i32
    %2 = arith.cmpi ne, %1, %c0_i32_0 : i32
    scf.if %2 {
      %cst_11 = arith.constant 0.000000e+00 : f32
      %16 = vector.broadcast %cst_11 : f32 to vector<1x128xf32>
      %c0_12 = arith.constant 0 : index
      %c0_13 = arith.constant 0 : index
      %17 = vector.load %arg6[%c0_12, %c0_13] : memref<1x128xf32, #tpu.memory_space<vmem>>, vector<1x128xf32>
      tpu.vector_store %arg6[%c0_12, %c0_13], %16 {strides = array<i32>} : memref<1x128xf32, #tpu.memory_space<vmem>>, vector<1x128xf32>,
    } else {
    }
    %c0 = arith.constant 0 : index
    %c0_1 = arith.constant 0 : index
    %3 = vector.load %arg3[%c0, %c0_1] : memref<1x16xf32, #tpu.memory_space<vmem>>, vector<1x16xf32>
    %c0_2 = arith.constant 0 : index
    %4 = memref.load %arg2[%c0_2] : memref<16xf32, #tpu.memory_space<smem>>
    %5 = vector.broadcast %4 : f32 to vector<1x16xf32>
    %6 = arith.mulf %3, %5 : vector<1x16xf32>
    %7 = arith.truncf %6 : vector<1x16xf32> to vector<1x16xbf16>
    %c0_3 = arith.constant 0 : index
    %c0_4 = arith.constant 0 : index
    %8 = vector.load %arg6[%c0_3, %c0_4] : memref<1x128xf32, #tpu.memory_space<vmem>>, vector<1x128xf32>
    %c0_5 = arith.constant 0 : index
    %c0_6 = arith.constant 0 : index
    %9 = vector.load %arg4[%c0_5, %c0_6] : memref<16x128xbf16, #tpu.memory_space<vmem>>, vector<16x128xbf16>
    %cst = arith.constant dense<0.000000e+00> : vector<1x128xf32>
    %10 = tpu.matmul %7, %9, %cst {dimension_numbers = #tpu.dot_dimension_numbers<[1], [0], [0], [1], [0, 0, 1, 1], [], []>} : vector<1x16xbf16>, vector<16x128xbf16>, vector<1x128xf32> -> vector<1x128xf32>
    %11 = arith.addf %8, %10 : vector<1x128xf32>
    %c0_7 = arith.constant 0 : index
    %c0_8 = arith.constant 0 : index
    %12 = vector.load %arg6[%c0_7, %c0_8] : memref<1x128xf32, #tpu.memory_space<vmem>>, vector<1x128xf32>
    tpu.vector_store %arg6[%c0_7, %c0_8], %11 {strides = array<i32>} : memref<1x128xf32, #tpu.memory_space<vmem>>, vector<1x128xf32>,
    %c0_i32_9 = arith.constant 0 : i32
    %13 = arith.cmpi eq, %arg1, %c0_i32_9 : i32
    %14 = arith.extui %13 : i1 to i32
    %c0_i32_10 = arith.constant 0 : i32
    %15 = arith.cmpi ne, %14, %c0_i32_10 : i32
    scf.if %15 {
      %c0_11 = arith.constant 0 : index
      %c0_12 = arith.constant 0 : index
      %16 = vector.load %arg6[%c0_11, %c0_12] : memref<1x128xf32, #tpu.memory_space<vmem>>, vector<1x128xf32>
      %c1 = arith.constant 1 : index
      %17 = memref.load %arg2[%c1] : memref<16xf32, #tpu.memory_space<smem>>
      %18 = vector.broadcast %17 : f32 to vector<1x128xf32>
      %19 = arith.addf %16, %18 : vector<1x128xf32>
      %cst_13 = arith.constant 0.000000e+00 : f32
      %20 = vector.broadcast %cst_13 : f32 to vector<1x128xf32>
      %c14 = arith.constant 14 : index
      %21 = memref.load %arg2[%c14] : memref<16xf32, #tpu.memory_space<smem>>
      %22 = vector.broadcast %21 : f32 to vector<1x128xf32>
      %23 = arith.addf %20, %22 : vector<1x128xf32>
      %c2 = arith.constant 2 : index
      %24 = memref.load %arg2[%c2] : memref<16xf32, #tpu.memory_space<smem>>
      %25 = vector.broadcast %24 : f32 to vector<1x128xf32>
      %26 = arith.mulf %19, %25 : vector<1x128xf32>
      %c6 = arith.constant 6 : index
      %27 = memref.load %arg2[%c6] : memref<16xf32, #tpu.memory_space<smem>>
      %28 = vector.broadcast %27 : f32 to vector<1x128xf32>
      %29 = arith.addf %26, %28 : vector<1x128xf32>
      %cst_14 = arith.constant 0.000000e+00 : f32
      %30 = vector.broadcast %cst_14 : f32 to vector<1x128xf32>
      %31 = arith.maximumf %29, %30 : vector<1x128xf32>
      %c10 = arith.constant 10 : index
      %32 = memref.load %arg2[%c10] : memref<16xf32, #tpu.memory_space<smem>>
      %33 = vector.broadcast %32 : f32 to vector<1x128xf32>
      %34 = arith.mulf %31, %33 : vector<1x128xf32>
      %35 = arith.addf %23, %34 : vector<1x128xf32>
      %c3 = arith.constant 3 : index
      %36 = memref.load %arg2[%c3] : memref<16xf32, #tpu.memory_space<smem>>
      %37 = vector.broadcast %36 : f32 to vector<1x128xf32>
      %38 = arith.mulf %19, %37 : vector<1x128xf32>
      %c7 = arith.constant 7 : index
      %39 = memref.load %arg2[%c7] : memref<16xf32, #tpu.memory_space<smem>>
      %40 = vector.broadcast %39 : f32 to vector<1x128xf32>
      %41 = arith.addf %38, %40 : vector<1x128xf32>
      %cst_15 = arith.constant 0.000000e+00 : f32
      %42 = vector.broadcast %cst_15 : f32 to vector<1x128xf32>
      %43 = arith.maximumf %41, %42 : vector<1x128xf32>
      %c11 = arith.constant 11 : index
      %44 = memref.load %arg2[%c11] : memref<16xf32, #tpu.memory_space<smem>>
      %45 = vector.broadcast %44 : f32 to vector<1x128xf32>
      %46 = arith.mulf %43, %45 : vector<1x128xf32>
      %47 = arith.addf %35, %46 : vector<1x128xf32>
      %c4 = arith.constant 4 : index
      %48 = memref.load %arg2[%c4] : memref<16xf32, #tpu.memory_space<smem>>
      %49 = vector.broadcast %48 : f32 to vector<1x128xf32>
      %50 = arith.mulf %19, %49 : vector<1x128xf32>
      %c8 = arith.constant 8 : index
      %51 = memref.load %arg2[%c8] : memref<16xf32, #tpu.memory_space<smem>>
      %52 = vector.broadcast %51 : f32 to vector<1x128xf32>
      %53 = arith.addf %50, %52 : vector<1x128xf32>
      %cst_16 = arith.constant 0.000000e+00 : f32
      %54 = vector.broadcast %cst_16 : f32 to vector<1x128xf32>
      %55 = arith.maximumf %53, %54 : vector<1x128xf32>
      %c12 = arith.constant 12 : index
      %56 = memref.load %arg2[%c12] : memref<16xf32, #tpu.memory_space<smem>>
      %57 = vector.broadcast %56 : f32 to vector<1x128xf32>
      %58 = arith.mulf %55, %57 : vector<1x128xf32>
      %59 = arith.addf %47, %58 : vector<1x128xf32>
      %c5 = arith.constant 5 : index
      %60 = memref.load %arg2[%c5] : memref<16xf32, #tpu.memory_space<smem>>
      %61 = vector.broadcast %60 : f32 to vector<1x128xf32>
      %62 = arith.mulf %19, %61 : vector<1x128xf32>
      %c9 = arith.constant 9 : index
      %63 = memref.load %arg2[%c9] : memref<16xf32, #tpu.memory_space<smem>>
      %64 = vector.broadcast %63 : f32 to vector<1x128xf32>
      %65 = arith.addf %62, %64 : vector<1x128xf32>
      %cst_17 = arith.constant 0.000000e+00 : f32
      %66 = vector.broadcast %cst_17 : f32 to vector<1x128xf32>
      %67 = arith.maximumf %65, %66 : vector<1x128xf32>
      %c13 = arith.constant 13 : index
      %68 = memref.load %arg2[%c13] : memref<16xf32, #tpu.memory_space<smem>>
      %69 = vector.broadcast %68 : f32 to vector<1x128xf32>
      %70 = arith.mulf %67, %69 : vector<1x128xf32>
      %71 = arith.addf %59, %70 : vector<1x128xf32>
      %c0_18 = arith.constant 0 : index
      %c0_19 = arith.constant 0 : index
      %72 = vector.load %arg5[%c0_18, %c0_19] : memref<1x128xf32, #tpu.memory_space<vmem>>, vector<1x128xf32>
      tpu.vector_store %arg5[%c0_18, %c0_19], %71 {strides = array<i32>} : memref<1x128xf32, #tpu.memory_space<vmem>>, vector<1x128xf32>,
    } else {
    }
    return
  }
  func.func @transform_0(%arg0: i32, %arg1: i32) -> i32 {
    %c0_i32 = arith.constant 0 : i32
    %c0_i32_0 = arith.constant 0 : i32
    return %c0_i32 : i32
  }
  func.func @transform_1(%arg0: i32, %arg1: i32) -> (i32, i32) {
    %c0_i32 = arith.constant 0 : i32
    %c0_i32_0 = arith.constant 0 : i32
    return %c0_i32, %arg1 : i32, i32
  }
  func.func @transform_2(%arg0: i32, %arg1: i32) -> (i32, i32) {
    %c0_i32 = arith.constant 0 : i32
    return %arg1, %arg0 : i32, i32
  }
  func.func @transform_3(%arg0: i32, %arg1: i32) -> (i32, i32) {
    %c0_i32 = arith.constant 0 : i32
    %c0_i32_0 = arith.constant 0 : i32
    return %c0_i32, %arg0 : i32, i32
  }
}

</mosaic_0001>

<llo_original>
// kernel: tpu_custom_call.1
$region0: #{tpu_custom_call.1}
  #allocation0 [shape = 'u32[]', space=smem, size = 0x4, offset = 0x4, fixed_abs, tag = 'smem constant byte address 0x4 - core index']
  #allocation1 [shape = 'u32[144,128]{1,0:T(1,128)}', space=vmem, size = 0x12000, scoped, tag = 'internal scratch']
  #allocation2 [shape = 'f32[1,128]{1,0:T(1,128)}', space=vmem, size = 0x200, scoped, tag = 'scratch operand']
  %s0 = inlined_call_operand.hbm [shape: f32[16], index: 0, kind: input, shape index: {}]
  %s1 = inlined_call_operand.hbm [shape: f32[1,16], index: 1, kind: input, shape index: {}]
  %s2 = inlined_call_operand.hbm [shape: bf16[16,128], index: 2, kind: input, shape index: {}]
  %s3 = inlined_call_operand.hbm [shape: f32[1,128], index: 3, kind: output, shape index: {}]
  %s4 = sld [smem:[#allocation0]]
  $region42: #{tpu_custom_call.1} parent=0
    _
  %s6 = ssub.s32 1, %s4
  %s7 = scalar_select 0, %s6, %s4
  $region1: #{tpu_custom_call.1} parent=0
    #allocation3 [shape = 'u8[512]{0}', space=smem, size = 0x200, scoped, tag = 'input window, operand 0, single buffered']
    #allocation4 [shape = 's32[1]{0}', space=sflag, size = 0x4, scoped, tag = 'scoped memory for tpu_custom_call.1']
    #allocation5 [shape = 's32[1]{0}', space=sflag, size = 0x4, scoped, tag = 'scoped memory for tpu_custom_call.1']
    #allocation6 [shape = 's32[1]{0}', space=sflag, size = 0x4, scoped, tag = 'scoped memory for tpu_custom_call.1']
    #allocation7 [shape = 'u8[512]{0}', space=vmem, size = 0x400, scoped, tag = 'input window, operand 1, single buffered']
    #allocation8 [shape = 'u8[4096]{0}', space=vmem, size = 0x1000, scoped, tag = 'input window, operand 2, single buffered']
    #allocation9 [shape = 's32[1]{0}', space=sflag, size = 0x4, scoped, tag = 'scoped memory for tpu_custom_call.1']
    #allocation10 [shape = 'u8[512]{0}', space=vmem, size = 0x400, scoped, tag = 'output window, operand 0, single buffered']
    %8 = vsyncpa [#allocation6], 0
    %9 = vsyncpa [#allocation4], 0
    %10 = vsyncpa [#allocation9], 0
    %11 = vsyncpa [#allocation5], 0
    // Predicated region
    $region2: #{tpu_custom_call.1} parent=1 // pred_check
      _
    $region3: #{tpu_custom_call.1} parent=1 // pred_check_branch
      %13 = sbr.rel (0) target = $region5
    $region4: #{tpu_custom_call.1} parent=1 // pred_region
      %s15 = ssub.s32 16, 16
      %16 = vsyncadd [#allocation6], %s15
      %19 = dma.hbm_to_smem %s0, 16, [#allocation3], [#allocation6]
    $region5: #{tpu_custom_call.1} parent=1 // pred_fallthru
      _
    // Predicated region
    $region6: #{tpu_custom_call.1} parent=1 // pred_check
      _
    $region7: #{tpu_custom_call.1} parent=1 // pred_check_branch
      %21 = sbr.rel (0) target = $region9
    $region8: #{tpu_custom_call.1} parent=1 // pred_region
      %s23 = ssub.s32 16, 16
      %24 = vsyncadd [#allocation4], %s23
      %s26 = sshll.u32 [#allocation7], 4
      %s27 = int_to_ptr.vmem [resolvable:$true] %s26
      %29 = dma.hbm_to_vmem [thread:$0]  %s1, 16, %s27, [#allocation4]
    $region9: #{tpu_custom_call.1} parent=1 // pred_fallthru
      _
    // Predicated region
    $region10: #{tpu_custom_call.1} parent=1 // pred_check
      _
    $region11: #{tpu_custom_call.1} parent=1 // pred_check_branch
      %31 = sbr.rel (0) target = $region13
    $region12: #{tpu_custom_call.1} parent=1 // pred_region
      %s33 = ssub.s32 128, 128
      %34 = vsyncadd [#allocation9], %s33
      %s35 = sshll.u32 [#allocation8], 4
      %s36 = int_to_ptr.vmem [resolvable:$true] %s35
      %41 = dma.hbm_to_vmem [thread:$0]  %s2, 128, %s36, [#allocation9], 64, 64, 4
    $region13: #{tpu_custom_call.1} parent=1 // pred_fallthru
      _
    // Predicated region
    $region14: #{tpu_custom_call.1} parent=1 // pred_check
      _
    $region15: #{tpu_custom_call.1} parent=1 // pred_check_branch
      %43 = sbr.rel (0) target = $region17
    $region16: #{tpu_custom_call.1} parent=1 // pred_region
      %44 = dma.done [#allocation6], 16
    $region17: #{tpu_custom_call.1} parent=1 // pred_fallthru
      _
    // Predicated region
    $region18: #{tpu_custom_call.1} parent=1 // pred_check
      _
    $region19: #{tpu_custom_call.1} parent=1 // pred_check_branch
      %46 = sbr.rel (0) target = $region21
    $region20: #{tpu_custom_call.1} parent=1 // pred_region
      %47 = dma.done [#allocation4], 16
    $region21: #{tpu_custom_call.1} parent=1 // pred_fallthru
      _
    // Predicated region
    $region22: #{tpu_custom_call.1} parent=1 // pred_check
      _
    $region23: #{tpu_custom_call.1} parent=1 // pred_check_branch
      %49 = sbr.rel (0) target = $region25
    $region24: #{tpu_custom_call.1} parent=1 // pred_region
      %50 = dma.done [#allocation9], 128
    $region25: #{tpu_custom_call.1} parent=1 // pred_fallthru
      _
    %51 = sfence
    %p53 = scmp.eq.s32.totalorder 0, 0
    // Predicated region
    $region26: #{tpu_custom_call.1} parent=1 // pred_check
      %p54 = pneg %p53
    $region27: #{tpu_custom_call.1} parent=1 // pred_check_branch
      %56 = sbr.rel (%p54) target = $region29
    $region28: #{tpu_custom_call.1} parent=1 // pred_region
      %57 = vst [vmem:[#allocation2] sm:$0x1] 0.0
    $region29: #{tpu_custom_call.1} parent=1 // pred_fallthru
      _
    %v58 = vld [vmem:[#allocation7] sm:$0x1]
    %s59 = sld [smem:[#allocation3]]
    %v60 = vstv %s59
    %v61 = vmul.f32 %v58, %v60
    %v62 = vpack.c.bf16 %v61, %v61
    %v63 = vld [vmem:[#allocation2] sm:$0x1]
    %v64 = vld [vmem:[#allocation8] sm:$0xf]
    %v65 = vld [vmem:[#allocation8 + $0x4] sm:$0xf]
    %v68 = vunpack.c.l.b16 %v64
    %v69 = vunpack.c.l.b16 %v65
    %v70 = vpack.c.b16 %v69, %v68
    %vm72 = vcmask 130048
    %v74 = vsel %vm72, %v62, 0
    %76 = vmatprep.subr.bf16.mxu0 0
    %77 = vmatpush1.bf16.msra.mxu0 %v70
    %78 = vmatprep.subr.bf16.mxu0 0
    %79 = vmatpush1.bf16.msra.mxu0 0
    %80 = vmatprep.subr.bf16.mxu0 0
    %81 = vmatpush1.bf16.msra.mxu0 0
    %82 = vmatprep.subr.bf16.mxu0 0
    %83 = vmatpush1.bf16.msra.mxu0 0
    %84 = vmatprep.subr.bf16.mxu0 0
    %85 = vmatpush1.bf16.msra.mxu0 0
    %86 = vmatprep.subr.bf16.mxu0 0
    %87 = vmatpush1.bf16.msra.mxu0 0
    %88 = vmatprep.subr.bf16.mxu0 0
    %89 = vmatpush1.bf16.msra.mxu0 0
    %90 = vmatprep.subr.bf16.mxu0 0
    %91 = vmatpush1.bf16.msra.mxu0 0
    %92 = vmatprep.subr.bf16.mxu0 0
    %93 = vmatpush1.bf16.msra.mxu0 0
    %94 = vmatprep.subr.bf16.mxu0 0
    %95 = vmatpush1.bf16.msra.mxu0 0
    %96 = vmatprep.subr.bf16.mxu0 0
    %97 = vmatpush1.bf16.msra.mxu0 0
    %98 = vmatprep.subr.bf16.mxu0 0
    %99 = vmatpush1.bf16.msra.mxu0 0
    %100 = vmatprep.subr.bf16.mxu0 0
    %101 = vmatpush1.bf16.msra.mxu0 0
    %102 = vmatprep.subr.bf16.mxu0 0
    %103 = vmatpush1.bf16.msra.mxu0 0
    %104 = vmatprep.subr.bf16.mxu0 0
    %105 = vmatpush1.bf16.msra.mxu0 0
    %106 = vmatprep.subr.bf16.mxu0 0
    %107 = vmatpush1.bf16.msra.mxu0 0
    %108 = vmatprep.mubr.bf16.mxu0 0
    %109 = vmatmul.mubr.bf16.gmra.mrb[0].mxu0 %v74
    %v110 = vpop.f32.mrb[0].mxu0
    %v111 = vadd.f32 0.0, %v110
    %v112 = vpop.f32.mrb[0].mxu0
    %v113 = vpop.f32.mrb[0].mxu0
    %v114 = vpop.f32.mrb[0].mxu0
    %115 = vdwg.mxu0
    %v116 = vadd.f32 %v63, %v111
    %117 = vst [vmem:[#allocation2] sm:$0x1] %v116
    // Predicated region
    $region30: #{tpu_custom_call.1} parent=1 // pred_check
      %p118 = pneg %p53
    $region31: #{tpu_custom_call.1} parent=1 // pred_check_branch
      %120 = sbr.rel (%p118) target = $region33
    $region32: #{tpu_custom_call.1} parent=1 // pred_region
      %v121 = vld [vmem:[#allocation2] sm:$0x1]
      %s122 = sld [smem:[#allocation3 + $0x1]]
      %v123 = vstv %s122
      %v124 = vadd.f32 %v121, %v123
      %s125 = sld [smem:[#allocation3 + $0xe]]
      %v126 = vstv %s125
      %v127 = vadd.f32 %v126, 0.0
      %s128 = sld [smem:[#allocation3 + $0x2]]
      %v129 = vstv %s128
      %v130 = vmul.f32 %v124, %v129
      %s131 = sld [smem:[#allocation3 + $0x6]]
      %v132 = vstv %s131
      %v133 = vadd.f32 %v130, %v132
      %v134 = vmax.f32 %v133, 0.0
      %s135 = sld [smem:[#allocation3 + $0xa]]
      %v136 = vstv %s135
      %v137 = vmul.f32 %v134, %v136
      %v138 = vadd.f32 %v127, %v137
      %s139 = sld [smem:[#allocation3 + $0x3]]
      %v140 = vstv %s139
      %v141 = vmul.f32 %v124, %v140
      %s142 = sld [smem:[#allocation3 + $0x7]]
      %v143 = vstv %s142
      %v144 = vadd.f32 %v141, %v143
      %v145 = vmax.f32 %v144, 0.0
      %s146 = sld [smem:[#allocation3 + $0xb]]
      %v147 = vstv %s146
      %v148 = vmul.f32 %v145, %v147
      %v149 = vadd.f32 %v138, %v148
      %s150 = sld [smem:[#allocation3 + $0x4]]
      %v151 = vstv %s150
      %v152 = vmul.f32 %v124, %v151
      %s153 = sld [smem:[#allocation3 + $0x8]]
      %v154 = vstv %s153
      %v155 = vadd.f32 %v152, %v154
      %v156 = vmax.f32 %v155, 0.0
      %s157 = sld [smem:[#allocation3 + $0xc]]
      %v158 = vstv %s157
      %v159 = vmul.f32 %v156, %v158
      %v160 = vadd.f32 %v149, %v159
      %s161 = sld [smem:[#allocation3 + $0x5]]
      %v162 = vstv %s161
      %v163 = vmul.f32 %v124, %v162
      %s164 = sld [smem:[#allocation3 + $0x9]]
      %v165 = vstv %s164
      %v166 = vadd.f32 %v163, %v165
      %v167 = vmax.f32 %v166, 0.0
      %s168 = sld [smem:[#allocation3 + $0xd]]
      %v169 = vstv %s168
      %v170 = vmul.f32 %v167, %v169
      %v171 = vadd.f32 %v160, %v170
      %172 = vst [vmem:[#allocation10] sm:$0x1] %v171
    $region33: #{tpu_custom_call.1} parent=1 // pred_fallthru
      _
    // Predicated region
    $region34: #{tpu_custom_call.1} parent=1 // pred_check
      _
    $region35: #{tpu_custom_call.1} parent=1 // pred_check_branch
      %174 = sbr.rel (0) target = $region37
    $region36: #{tpu_custom_call.1} parent=1 // pred_region
      %s176 = ssub.s32 16, 16
      %177 = vsyncadd [#allocation5], %s176
      %s179 = sshll.u32 [#allocation10], 4
      %s180 = int_to_ptr.vmem [resolvable:$true] %s179
      %182 = dma.vmem_to_hbm [thread:$0]  %s180, 16, %s3, [#allocation5]
    $region37: #{tpu_custom_call.1} parent=1 // pred_fallthru
      _
    // Predicated region
    $region38: #{tpu_custom_call.1} parent=1 // pred_check
      _
    $region39: #{tpu_custom_call.1} parent=1 // pred_check_branch
      %184 = sbr.rel (0) target = $region41
    $region40: #{tpu_custom_call.1} parent=1 // pred_region
      %185 = dma.done [#allocation5], 16
    $region41: #{tpu_custom_call.1} parent=1 // pred_fallthru
      _
    %186 = vsyncpa [#allocation4], 1
    %187 = vsyncpa [#allocation9], 1
    %188 = vsyncpa [#allocation5], 1
    %189 = vsyncpa [#allocation6], 1

</llo_original>
